<compile_context>
chip_gen: v6e
topology: v6e:2x2x1
jax: 0.10.0
libtpu: 0.0.40
codegen_flags: <defaults>
</compile_context>

<pallas_src>
import functools

import jax
import jax.numpy as jnp
from jax.experimental import pallas as pl
from jax.experimental.pallas import tpu as pltpu


_MXU_MIN_C = 64                        # below this, an M=1 matmul wastes the MXU -> VPU/XLU path
_VMEM_IO_BUDGET = 16 * 1024 * 1024     # bytes for double-buffered in+out spatial tiles
_MAX_TILE_HW = 2048                    # lanes; past this, diminishing roofline returns
_VMEM_LIMIT_BYTES = 32 * 1024 * 1024   # explicit scoped-VMEM limit (safe on v5e/v6e/v7x)


def _choose_tile_hw(C, HW, dtype_bytes):
    # 2 arrays (in + out) x 2 buffers (double-buffered) x C x TILE x bytes <= budget
    max_tile = _VMEM_IO_BUDGET // max(1, 4 * C * dtype_bytes)
    tile = (max_tile // 128) * 128
    tile = max(128, min(tile, _MAX_TILE_HW))
    if tile >= HW:
        return HW                      # full spatial extent is always a legal block shape
    return tile


def _sse_kernel(b_ref, w_ref, x_ref, o_ref, *, use_mxu):
    # b_ref: SMEM (1,) bias scalar
    # w_ref: VMEM (1, C) pointwise-conv weight (resident across all grid steps)
    # x_ref / o_ref: VMEM (1, C, T) one spatial tile of one batch element
    x = x_ref[0]                                            # (C, T), input dtype
    if use_mxu:
        # Large C: channel reduction on the MXU, f32 accumulation, no full-tile upcast.
        logits = jnp.dot(w_ref[...].astype(x.dtype), x,
                         preferred_element_type=jnp.float32)            # (1, T)
    else:
        # Small C: VPU multiply + cross-sublane (XLU) sum beats an M=1 MXU matmul.
        w_col = w_ref[...].astype(jnp.float32).reshape(-1, 1)           # (C, 1)
        logits = jnp.sum(w_col * x.astype(jnp.float32),
                         axis=0, keepdims=True)                          # (1, T)
    s = jax.nn.sigmoid(logits + b_ref[0])                   # (1, T) f32, sigmoid on the EUP
    # Broadcast multiply in the input dtype (keeps bf16 tiles bf16).
    o_ref[0] = (x * s.astype(x.dtype)).astype(o_ref.dtype)


def sse_forward(x_nchw, weight, bias):
    """sSE forward: x * sigmoid(conv1x1(x)).  x: (N,C,H,W); weight: (1,C,1,1); bias: (1,)."""
    N, C, H, W = x_nchw.shape
    HW = H * W
    x = x_nchw.reshape(N, C, HW)
    w2d = weight.reshape(1, C).astype(jnp.float32)
    b1 = bias.reshape(1).astype(jnp.float32)

    dtype_bytes = jnp.dtype(x.dtype).itemsize
    tile_hw = _choose_tile_hw(C, HW, dtype_bytes)
    n_tiles = pl.cdiv(HW, tile_hw)
    use_mxu = C >= _MXU_MIN_C

    # Bandwidth-heavy op: tell XLA's scheduler so it can overlap surrounding HLOs.
    cost = pl.CostEstimate(
        flops=3 * N * C * HW,                       # channel reduction + broadcast multiply
        transcendentals=N * HW,                     # sigmoid
        bytes_accessed=2 * N * C * HW * dtype_bytes + C * 4 + 4,
    )

    out = pl.pallas_call(
        functools.partial(_sse_kernel, use_mxu=use_mxu),
        out_shape=jax.ShapeDtypeStruct((N, C, HW), x.dtype),
        grid_spec=pltpu.PrefetchScalarGridSpec(
            num_scalar_prefetch=0,
            grid=(N, n_tiles),
            in_specs=[
                pl.BlockSpec(memory_space=pltpu.MemorySpace.SMEM),       # bias (1,) scalar
                pl.BlockSpec((1, C), lambda n, s: (0, 0)),               # weight, VMEM-resident
                pl.BlockSpec((1, C, tile_hw), lambda n, s: (n, 0, s)),   # x spatial tile
            ],
            out_specs=pl.BlockSpec((1, C, tile_hw), lambda n, s: (n, 0, s)),
        ),
        compiler_params=pltpu.CompilerParams(
            dimension_semantics=("parallel", "parallel"),
            vmem_limit_bytes=_VMEM_LIMIT_BYTES,
        ),
        cost_estimate=cost,
    )(b1, w2d, x)

    return out.reshape(N, C, H, W)


if __name__ == "__main__":
    key = jax.random.PRNGKey(0)
    k_x, k_w, k_b = jax.random.split(key, 3)

    N, C, H, W = 2, 4, 16, 16
    x = jax.random.normal(k_x, (N, C, H, W), dtype=jnp.float32)
    # Deterministic synthetic parameters (Conv2d(in=C, out=1, kernel_size=1) shapes).
    weight = jax.random.normal(k_w, (1, C, 1, 1), dtype=jnp.float32) * 0.1
    bias = jax.random.normal(k_b, (1,), dtype=jnp.float32) * 0.1

    out = jax.block_until_ready(sse_forward(x, weight, bias))

    # Pure-JAX reference for a correctness check.
    logits = jnp.einsum("nchw,c->nhw", x, weight.reshape(C)) + bias[0]
    ref = x * jax.nn.sigmoid(logits)[:, None, :, :]
    assert out.shape == (N, C, H, W)
    assert jnp.allclose(out, ref, atol=1e-5, rtol=1e-5)

    print("KERNEL_OK")
</pallas_src>

<mosaic_0001>
module attributes {stable_mosaic.version = 11 : i64} {
  func.func @_sse_kernel(%arg0: i32, %arg1: i32, %arg2: memref<1xf32, #tpu.memory_space<smem>>, %arg3: memref<1x4xf32, #tpu.memory_space<vmem>>, %arg4: memref<1x4x256xf32, #tpu.memory_space<vmem>>, %arg5: memref<1x4x256xf32, #tpu.memory_space<vmem>>) attributes {dimension_semantics = [#tpu.dimension_semantics<parallel>, #tpu.dimension_semantics<parallel>], iteration_bounds = array<i64: 2, 1>, scalar_prefetch = 0 : i64, scratch_operands = 0 : i64, tpu.core_type = #tpu.core_type<tc>, window_params = [{transform_indices = @transform_0, window_bounds = array<i64: 1>}, {pipeline_mode = #tpu.pipeline_mode<synchronous>, transform_indices = @transform_1, window_bounds = array<i64: 1, 4>}, {transform_indices = @transform_2, window_bounds = array<i64: 1, 4, 256>}, {transform_indices = @transform_3, window_bounds = array<i64: 1, 4, 256>}]} {
    %c0 = arith.constant 0 : index
    %c0_0 = arith.constant 0 : index
    %c0_1 = arith.constant 0 : index
    %0 = vector.load %arg4[%c0, %c0_0, %c0_1] : memref<1x4x256xf32, #tpu.memory_space<vmem>>, vector<1x4x256xf32>
    %1 = vector.shape_cast %0 : vector<1x4x256xf32> to vector<4x256xf32>
    %c0_2 = arith.constant 0 : index
    %c0_3 = arith.constant 0 : index
    %2 = vector.load %arg3[%c0_2, %c0_3] : memref<1x4xf32, #tpu.memory_space<vmem>>, vector<1x4xf32>
    %3 = vector.shape_cast %2 : vector<1x4xf32> to vector<4x1xf32>
    %4 = vector.broadcast %3 : vector<4x1xf32> to vector<4x256xf32>
    %5 = arith.mulf %4, %1 : vector<4x256xf32>
    %cst = arith.constant dense<0.000000e+00> : vector<256xf32>
    %6 = vector.multi_reduction <add>, %5, %cst [0] : vector<4x256xf32> to vector<256xf32>
    %7 = vector.shape_cast %6 : vector<256xf32> to vector<1x256xf32>
    %c0_4 = arith.constant 0 : index
    %8 = memref.load %arg2[%c0_4] : memref<1xf32, #tpu.memory_space<smem>>
    %9 = vector.broadcast %8 : f32 to vector<1x256xf32>
    %10 = arith.addf %7, %9 : vector<1x256xf32>
    %11 = arith.negf %10 : vector<1x256xf32>
    %12 = math.exp %11 : vector<1x256xf32>
    %cst_5 = arith.constant 1.000000e+00 : f32
    %13 = vector.broadcast %cst_5 : f32 to vector<1x256xf32>
    %14 = arith.addf %13, %12 : vector<1x256xf32>
    %15 = arith.divf %13, %14 : vector<1x256xf32>
    %16 = vector.broadcast %15 : vector<1x256xf32> to vector<4x256xf32>
    %17 = arith.mulf %1, %16 : vector<4x256xf32>
    %c0_6 = arith.constant 0 : index
    %c0_7 = arith.constant 0 : index
    %c0_8 = arith.constant 0 : index
    %18 = vector.load %arg5[%c0_6, %c0_7, %c0_8] : memref<1x4x256xf32, #tpu.memory_space<vmem>>, vector<1x4x256xf32>
    %19 = vector.shape_cast %18 : vector<1x4x256xf32> to vector<4x256xf32>
    %20 = vector.shape_cast %17 : vector<4x256xf32> to vector<1x4x256xf32>
    tpu.vector_store %arg5[%c0_6, %c0_7, %c0_8], %20 {strides = array<i32>} : memref<1x4x256xf32, #tpu.memory_space<vmem>>, vector<1x4x256xf32>,
    return
  }
  func.func @transform_0(%arg0: i32, %arg1: i32) -> i32 {
    %c0_i32 = arith.constant 0 : i32
    %c0_i32_0 = arith.constant 0 : i32
    return %c0_i32 : i32
  }
  func.func @transform_1(%arg0: i32, %arg1: i32) -> (i32, i32) {
    %c0_i32 = arith.constant 0 : i32
    %c0_i32_0 = arith.constant 0 : i32
    %c0_i32_1 = arith.constant 0 : i32
    return %c0_i32, %c0_i32_0 : i32, i32
  }
  func.func @transform_2(%arg0: i32, %arg1: i32) -> (i32, i32, i32) {
    %c0_i32 = arith.constant 0 : i32
    %c0_i32_0 = arith.constant 0 : i32
    return %arg0, %c0_i32, %arg1 : i32, i32, i32
  }
  func.func @transform_3(%arg0: i32, %arg1: i32) -> (i32, i32, i32) {
    %c0_i32 = arith.constant 0 : i32
    %c0_i32_0 = arith.constant 0 : i32
    return %arg0, %c0_i32, %arg1 : i32, i32, i32
  }
}

</mosaic_0001>

<llo_original>
// kernel: tpu_custom_call.1
$region0: #{tpu_custom_call.1}
  #allocation0 [shape = 'u32[]', space=smem, size = 0x4, offset = 0x4, fixed_abs, tag = 'smem constant byte address 0x4 - core index']
  #allocation1 [shape = 'u32[144,128]{1,0:T(1,128)}', space=vmem, size = 0x12000, scoped, tag = 'internal scratch']
  #allocation2 [shape = 'f32[1]{0:T(128)S(6)}', space=smem, size = 0x200, scoped, tag = 'scoped memory for tpu_custom_call.1']
  %s0 = inlined_call_operand.<no memory space> [shape: f32[1], index: 0, kind: input, shape index: {}]
  %s1 = inlined_call_operand.vmem [shape: f32[1,4], index: 1, kind: input, shape index: {}]
  %s2 = inlined_call_operand.hbm [shape: f32[2,4,256], index: 2, kind: input, shape index: {}]
  %s3 = inlined_call_operand.hbm [shape: f32[2,4,256], index: 3, kind: output, shape index: {}]
  %s4 = sld [smem:[#allocation0]]
  $region49: #{tpu_custom_call.1} parent=0
    _
  %s6 = ssub.s32 1, %s4
  %s7 = scalar_select 0, %s6, %s4
  %8 = sst [smem:[#allocation2]] %s0
  $region1: #{tpu_custom_call.1} parent=0
    #allocation3 [shape = 'u8[8192]{0}', space=vmem, size = 0x2000, scoped, tag = 'input window, operand 2']
    #allocation4 [shape = 's32[2]{0}', space=sflag, size = 0x8, scoped, tag = 'scoped memory for tpu_custom_call.1']
    #allocation5 [shape = 's32[2]{0}', space=sflag, size = 0x8, scoped, tag = 'scoped memory for tpu_custom_call.1']
    #allocation6 [shape = 'u8[8192]{0}', space=vmem, size = 0x2000, scoped, tag = 'output window, operand 0']
    %9 = vsyncpa [#allocation4], 0
    %s10 = scalar_lea.sflag [#allocation4], 1
    %11 = vsyncpa %s10, 0
    %12 = vsyncpa [#allocation5], 0
    %s13 = scalar_lea.sflag [#allocation5], 1
    %14 = vsyncpa %s13, 0
    loop: start=0, step=1, limit=4
    $region2: #{tpu_custom_call.1} parent=1 // loop_pre_header
      _
    $region3: #{tpu_custom_call.1} parent=1 // loop_header
      %s16 = sphi 0, %s20
      %p17 = scmp.ge.s32.totalorder %s16, 4
      %s23 = sphi 0, %s35
      %s24 = sphi 0, %s31
      %s25 = sphi 0, %s23
      %s26 = sphi 0, %s24
      %s27 = sphi 0, %s25
      %s28 = sphi 0, %s26
      %s36 = sphi 0, %s36
      %s38 = sphi 0, %s36
      %s39 = sphi 0, %s38
      %s53 = sphi 0, %s39
      %s57 = sphi 0, %s57
      %s59 = sphi 0, %s57
      %s60 = sphi 0, %s59
      %s74 = sphi 0, %s60
      %s82 = sphi 0, %s84
      %s85 = sphi 0, %s82
      %s86 = sphi 0, %s85
      %s102 = sphi 0, %s86
      %s110 = sphi 0, %s112
      %s113 = sphi 0, %s110
      %s114 = sphi 0, %s113
      %s130 = sphi 0, %s114
    $region4: #{tpu_custom_call.1} parent=1 // loop_header_branch
      %19 = sbr.rel (%p17) target = $region8
    $region5: #{tpu_custom_call.1} parent=1 // loop_body
      %s21 = ssub.s32 %s16, 1
      %s22 = ssub.s32 %s16, 2
      %s29 = sadd.s32 1, %s24
      %p30 = scmp.ge.s32.totalorder %s29, 1
      %s31 = scalar_select %p30, 0, %s29
      %s32 = sadd.s32 1, %s23
      %s33 = scalar_select %p30, %s32, %s23
      %p34 = scmp.ge.s32.totalorder %s33, 2
      %s35 = scalar_select %p34, 0, %s33
      %s37 = sadd.s32 %s36, 1
      %p40 = scmp.eq.s32.totalorder %s16, 1
      %p41 = scmp.ne.s32.totalorder %s36, %s38
      %p42 = scmp.eq.s32.totalorder %s16, 0
      %p43 = por %p41, %p42
      %p44 = scmp.ne.s32.totalorder %s36, %s38
      %p45 = scmp.eq.s32.totalorder %s21, 1
      %p46 = por %p44, %p45
      %p47 = scmp.ne.s32.totalorder %s38, %s39
      %p48 = scmp.eq.s32.totalorder %s21, 0
      %p49 = por %p47, %p48
      %p50 = scmp.ne.s32.totalorder %s38, %s39
      %p51 = scmp.eq.s32.totalorder %s22, 1
      %p52 = por %p50, %p51
      %p54 = scmp.ne.s32.totalorder %s39, %s53
      %p55 = scmp.eq.s32.totalorder %s22, 0
      %p56 = por %p54, %p55
      %s58 = sadd.s32 %s57, 1
      %p61 = scmp.eq.s32.totalorder %s16, 1
      %p62 = scmp.ne.s32.totalorder %s57, %s59
      %p63 = scmp.eq.s32.totalorder %s16, 0
      %p64 = por %p62, %p63
      %p65 = scmp.ne.s32.totalorder %s57, %s59
      %p66 = scmp.eq.s32.totalorder %s21, 1
      %p67 = por %p65, %p66
      %p68 = scmp.ne.s32.totalorder %s59, %s60
      %p69 = scmp.eq.s32.totalorder %s21, 0
      %p70 = por %p68, %p69
      %p71 = scmp.ne.s32.totalorder %s59, %s60
      %p72 = scmp.eq.s32.totalorder %s22, 1
      %p73 = por %p71, %p72
      %p75 = scmp.ne.s32.totalorder %s60, %s74
      %p76 = scmp.eq.s32.totalorder %s22, 0
      %p77 = por %p75, %p76
      %s78 = ssub.s32 %s23, %s35
      %s79 = ssub.s32 %s24, %s31
      %s80 = sor.u32 %s78, %s79
      %p81 = scmp.eq.s32.totalorder %s80, 0
      %s83 = sadd.s32 %s82, 1
      %s84 = scalar_select %p81, %s82, %s83
      %p87 = pneg %p81
      %p88 = scmp.eq.s32.totalorder %s16, 1
      %p89 = por %p87, %p88
      %p90 = scmp.ne.s32.totalorder %s82, %s85
      %p91 = scmp.eq.s32.totalorder %s16, 0
      %p92 = por %p90, %p91
      %p93 = scmp.ne.s32.totalorder %s82, %s85
      %p94 = scmp.eq.s32.totalorder %s21, 1
      %p95 = por %p93, %p94
      %p96 = scmp.ne.s32.totalorder %s85, %s86
      %p97 = scmp.eq.s32.totalorder %s21, 0
      %p98 = por %p96, %p97
      %p99 = scmp.ne.s32.totalorder %s85, %s86
      %p100 = scmp.eq.s32.totalorder %s22, 1
      %p101 = por %p99, %p100
      %p103 = scmp.ne.s32.totalorder %s86, %s102
      %p104 = scmp.eq.s32.totalorder %s22, 0
      %p105 = por %p103, %p104
      %s106 = ssub.s32 %s23, %s35
      %s107 = ssub.s32 %s24, %s31
      %s108 = sor.u32 %s106, %s107
      %p109 = scmp.eq.s32.totalorder %s108, 0
      %s111 = sadd.s32 %s110, 1
      %s112 = scalar_select %p109, %s110, %s111
      %p115 = pneg %p109
      %p116 = scmp.eq.s32.totalorder %s16, 1
      %p117 = por %p115, %p116
      %p118 = scmp.ne.s32.totalorder %s110, %s113
      %p119 = scmp.eq.s32.totalorder %s16, 0
      %p120 = por %p118, %p119
      %p121 = scmp.ne.s32.totalorder %s110, %s113
      %p122 = scmp.eq.s32.totalorder %s21, 1
      %p123 = por %p121, %p122
      %p124 = scmp.ne.s32.totalorder %s113, %s114
      %p125 = scmp.eq.s32.totalorder %s21, 0
      %p126 = por %p124, %p125
      %p127 = scmp.ne.s32.totalorder %s113, %s114
      %p128 = scmp.eq.s32.totalorder %s22, 1
      %p129 = por %p127, %p128
      %p131 = scmp.ne.s32.totalorder %s114, %s130
      %p132 = scmp.eq.s32.totalorder %s22, 0
      %p133 = por %p131, %p132
      %p134 = scmp.le.s32.totalorder 1, %s16
      %p135 = scmp.lt.s32.totalorder %s16, 3
      %p136 = pnand %p134, %p135
      %p137 = pneg %p136
      // Predicated region
      $region9: #{tpu_custom_call.1} parent=5 // pred_check
        _
      $region10: #{tpu_custom_call.1} parent=5 // pred_check_branch
        %139 = sbr.rel (%p136) target = $region12
      $region11: #{tpu_custom_call.1} parent=5 // pred_region
        %s140 = ssub.s32 %s16, 1
        // Predicated region
        $region13: #{tpu_custom_call.1} parent=11 // pred_check
          %p141 = pneg %p49
        $region14: #{tpu_custom_call.1} parent=11 // pred_check_branch
          %143 = sbr.rel (%p141) target = $region16
        $region15: #{tpu_custom_call.1} parent=11 // pred_region
          _
        $region16: #{tpu_custom_call.1} parent=11 // pred_fallthru
          _
        // Predicated region
        $region17: #{tpu_custom_call.1} parent=11 // pred_check
          %p144 = pneg %p70
        $region18: #{tpu_custom_call.1} parent=11 // pred_check_branch
          %146 = sbr.rel (%p144) target = $region20
        $region19: #{tpu_custom_call.1} parent=11 // pred_region
          _
        $region20: #{tpu_custom_call.1} parent=11 // pred_fallthru
          _
      $region12: #{tpu_custom_call.1} parent=5 // pred_fallthru
        _
      %p147 = scmp.lt.s32.totalorder %s16, 2
      // Predicated region
      $region21: #{tpu_custom_call.1} parent=5 // pred_check
        %p148 = pneg %p147
      $region22: #{tpu_custom_call.1} parent=5 // pred_check_branch
        %150 = sbr.rel (%p148) target = $region24
      $region23: #{tpu_custom_call.1} parent=5 // pred_region
        // Predicated region
        $region25: #{tpu_custom_call.1} parent=23 // pred_check
          %p151 = pneg %p92
        $region26: #{tpu_custom_call.1} parent=23 // pred_check_branch
          %153 = sbr.rel (%p151) target = $region28
        $region27: #{tpu_custom_call.1} parent=23 // pred_region
          %s154 = sand.u32 %s82, 1
          %s155 = scalar_lea.sflag [#allocation4], %s154
          %s156 = sand.u32 %s82, 1
          %s157 = smul.addr %s156, 8
          %s158 = scalar_lea.vmem [#allocation3], %s157
          %s159 = smul.u32 2, %s24
          %s161 = ssub.s32 128, 128
          %162 = vsyncadd %s155, %s161
          %s163 = smul.addr %s23, 2
          %s164 = sadd.s32 %s159, %s163
          %s165 = smul.addr %s164, 64
          %s166 = scalar_lea.hbm %s2, %s165
          %s168 = sshll.u32 %s158, 4
          %s169 = int_to_ptr.vmem [resolvable:$true] %s168
          %171 = dma.hbm_to_vmem [thread:$0]  %s166, 128, %s169, %s155
        $region28: #{tpu_custom_call.1} parent=23 // pred_fallthru
          _
      $region24: #{tpu_custom_call.1} parent=5 // pred_fallthru
        _
      %p172 = scmp.le.s32.totalorder 1, %s16
      %p173 = scmp.lt.s32.totalorder %s16, 3
      %p174 = pnand %p172, %p173
      %p175 = pneg %p174
      // Predicated region
      $region29: #{tpu_custom_call.1} parent=5 // pred_check
        _
      $region30: #{tpu_custom_call.1} parent=5 // pred_check_branch
        %177 = sbr.rel (%p174) target = $region32
      $region31: #{tpu_custom_call.1} parent=5 // pred_region
        %s178 = ssub.s32 %s16, 1
        %s179 = sand.u32 %s85, 1
        %s180 = scalar_lea.sflag [#allocation4], %s179
        %s181 = sand.u32 %s85, 1
        %s182 = smul.addr %s181, 8
        %s183 = scalar_lea.vmem [#allocation3], %s182
        // Predicated region
        $region33: #{tpu_custom_call.1} parent=31 // pred_check
          %p184 = pneg %p98
        $region34: #{tpu_custom_call.1} parent=31 // pred_check_branch
          %186 = sbr.rel (%p184) target = $region36
        $region35: #{tpu_custom_call.1} parent=31 // pred_region
          %187 = dma.done %s180, 128
        $region36: #{tpu_custom_call.1} parent=31 // pred_fallthru
          _
        %p188 = pneg %p49
        %p189 = pneg %p46
        %p190 = pneg %p70
        %p191 = pneg %p67
        %s192 = sand.u32 %s85, 1
        %s193 = scalar_lea.sflag [#allocation4], %s192
        %s194 = sand.u32 %s85, 1
        %s195 = smul.addr %s194, 8
        %s196 = scalar_lea.vmem [#allocation3], %s195
        %p197 = pneg %p98
        %p198 = pneg %p95
        %p199 = pneg %p126
        %p200 = pneg %p123
        %s201 = sand.u32 %s113, 1
        %s202 = scalar_lea.sflag [#allocation5], %s201
        %s203 = sand.u32 %s113, 1
        %s204 = smul.addr %s203, 8
        %s205 = scalar_lea.vmem [#allocation6], %s204
        %s206 = smul.u32 2, %s26
        %s207 = smul.u32 2, %s26
        %v208 = vld [vmem:[%s183] sm:$0xff]
        %v209 = vld [vmem:[%s1] sm:$0x1]
        %v210 = vlaneseq
        %v211 = vshrl.u32 %v210, 7
        %v212 = vsub.s32 0, %v211
        %v213 = vrot.slane %v209, %v212
        %215 = vbcast.lane.b32.xlu0 %v213, 256
        %v216 = vpop.permute.xlu0 %215
        %v218 = vcombine.high %v208, %v208
        %v220 = vmul.f32 %v216, %v208
        %v221 = vmul.f32 %v216, %v218
        %vm222 = vcmask 1043456
        %v223 = vsel %vm222, %v220, 0.0
        %v224 = vrot.slane %v223, 4
        %v225 = vadd.f32 %v223, %v224
        %v226 = vrot.slane %v225, 2
        %v227 = vadd.f32 %v225, %v226
        %v228 = vrot.slane %v227, 1
        %v229 = vadd.f32 %v227, %v228
        %v230 = vsel %vm222, %v221, 0.0
        %v231 = vrot.slane %v230, 4
        %v232 = vadd.f32 %v230, %v231
        %v233 = vrot.slane %v232, 2
        %v234 = vadd.f32 %v232, %v233
        %v235 = vrot.slane %v234, 1
        %v236 = vadd.f32 %v234, %v235
        %s237 = sld [smem:[#allocation2]]
        %v238 = vstv %s237
        %v239 = vadd.f32 %v229, %v238
        %v240 = vadd.f32 %v236, %v238
        %v241 = vxor.u32 %v239, 2147483648
        %v242 = vxor.u32 %v240, 2147483648
        %v243 = vmul.f32 %v241, 1.442695
        %v244 = vpow.pop %v243
        %v245 = vmul.f32 %v242, 1.442695
        %v246 = vpow.pop %v245
        %v247 = vadd.f32 %v244, 1.0
        %v248 = vadd.f32 %v246, 1.0
        %v249 = vrcp.pop %v247
        %v250 = vmul.f32 1.0, %v249
        %v251 = vrcp.pop %v248
        %v252 = vmul.f32 1.0, %v251
        %v255 = vcombine.low %v250, %v252
        %v257 = vmul.f32 %v208, %v255
        %258 = vst [vmem:[%s205] sm:$0xff] %v257
        %s259 = sand.u32 %s113, 1
        %s260 = scalar_lea.sflag [#allocation5], %s259
        %s261 = sand.u32 %s113, 1
        %s262 = smul.addr %s261, 8
        %s263 = scalar_lea.vmem [#allocation6], %s262
        // Predicated region
        $region37: #{tpu_custom_call.1} parent=31 // pred_check
          %p264 = pneg %p123
        $region38: #{tpu_custom_call.1} parent=31 // pred_check_branch
          %266 = sbr.rel (%p264) target = $region40
        $region39: #{tpu_custom_call.1} parent=31 // pred_region
          %s267 = smul.u32 2, %s26
          %s269 = ssub.s32 128, 128
          %270 = vsyncadd %s260, %s269
          %s271 = smul.addr %s25, 2
          %s272 = sadd.s32 %s267, %s271
          %s273 = smul.addr %s272, 64
          %s274 = scalar_lea.hbm %s3, %s273
          %s276 = sshll.u32 %s263, 4
          %s277 = int_to_ptr.vmem [resolvable:$true] %s276
          %279 = dma.vmem_to_hbm [thread:$0]  %s277, 128, %s274, %s260
        $region40: #{tpu_custom_call.1} parent=31 // pred_fallthru
          _
      $region32: #{tpu_custom_call.1} parent=5 // pred_fallthru
        _
      %p280 = scmp.le.s32.totalorder 2, %s16
      // Predicated region
      $region41: #{tpu_custom_call.1} parent=5 // pred_check
        %p281 = pneg %p280
      $region42: #{tpu_custom_call.1} parent=5 // pred_check_branch
        %283 = sbr.rel (%p281) target = $region44
      $region43: #{tpu_custom_call.1} parent=5 // pred_region
        %s284 = ssub.s32 %s16, 2
        // Predicated region
        $region45: #{tpu_custom_call.1} parent=43 // pred_check
          %p285 = pneg %p129
        $region46: #{tpu_custom_call.1} parent=43 // pred_check_branch
          %287 = sbr.rel (%p285) target = $region48
        $region47: #{tpu_custom_call.1} parent=43 // pred_region
          %s288 = sand.u32 %s114, 1
          %s289 = scalar_lea.sflag [#allocation5], %s288
          %s290 = sand.u32 %s114, 1
          %s291 = smul.addr %s290, 8
          %s292 = scalar_lea.vmem [#allocation6], %s291
          %293 = dma.done %s289, 128
        $region48: #{tpu_custom_call.1} parent=43 // pred_fallthru
          _
      $region44: #{tpu_custom_call.1} parent=5 // pred_fallthru
        _
    $region6: #{tpu_custom_call.1} parent=1 // loop_footer
      %s20 = sadd.s32 1, %s16
    $region7: #{tpu_custom_call.1} parent=1 // loop_footer_branch
      %15 = sbr.rel target = $region3
    $region8: #{tpu_custom_call.1} parent=1 // loop_exit
      _
    %294 = vsyncpa [#allocation4], 1
    %s295 = scalar_lea.sflag [#allocation4], 1
    %296 = vsyncpa %s295, 1
    %297 = vsyncpa [#allocation5], 1
    %s298 = scalar_lea.sflag [#allocation5], 1
    %299 = vsyncpa %s298, 1

</llo_original>
